<compile_context>
chip_gen: v7x
topology: tpu7x:2x2x1
jax: 0.10.0
libtpu: 0.0.40
codegen_flags: <defaults>
</compile_context>

<pallas_src>
import numpy as np
import jax
import jax.numpy as jnp
from jax.experimental import pallas as pl
from jax.experimental.pallas import tpu as pltpu

N_ANTENNA = 64
N_BEAM = 2
BATCH = 16           # small demo batch; runs as a single grid step


def node_kernel(x_ref, w_ref, o_ref):
    """One MXU matmul + per-beam power, fully in VMEM.

    x_ref : (TB, 2*Na)      [x_real | x_imag]
    w_ref : (2*Na, 2*Nb)    combined codebook [[wr^T, wi^T], [-wi^T, wr^T]]
    o_ref : (TB, Nb)        beamforming gain (power), f32
    """
    nb = o_ref.shape[1]
    # Single matmul -> [yr | yi] directly; f32 accumulation regardless of input dtype.
    y = jnp.dot(x_ref[...], w_ref[...], preferred_element_type=jnp.float32)
    yr = y[:, :nb]
    yi = y[:, nb:]
    # ComputePower: |y|^2 per beam (f32 elementwise -> safe on v5e too).
    o_ref[...] = (yr * yr + yi * yi).astype(o_ref.dtype)


def make_combined_weight(w_real, w_imag, dtype=jnp.float32):
    """Build the real-valued combined codebook once (outside the hot path).

    y = x @ W_big  with  yr = xr@wr^T - xi@wi^T,  yi = xr@wi^T + xi@wr^T.
    Shape: (2*Na, 2*Nb).
    """
    return jnp.concatenate(
        [
            jnp.concatenate([w_real.T, w_imag.T], axis=1),    # rows hit by x_real
            jnp.concatenate([-w_imag.T, w_real.T], axis=1),   # rows hit by x_imag
        ],
        axis=0,
    ).astype(dtype)


def node_forward(x, w_big, *, max_batch_tile=2048):
    """x: (B, 2*Na) f32 or bf16, w_big: (2*Na, 2*Nb) -> (B, Nb) f32."""
    B, two_na = x.shape
    two_nb = w_big.shape[1]
    nb = two_nb // 2
    assert w_big.shape[0] == two_na

    # Keep the matmul operands in the same (input) dtype; accumulate in f32.
    w_big = w_big.astype(x.dtype)

    # Batch tile selection:
    #  - small batches: one block, grid=(1,)  (block dim == full dim is always legal)
    #  - large batches: big sublane-aligned tile (8 for f32, 16 for bf16 packing),
    #    capped at max_batch_tile (~1 MiB f32 / 0.5 MiB bf16 per x tile ->
    #    double-buffered it is far under every generation's VMEM, incl. v7x 64 MiB).
    if B <= max_batch_tile:
        tb = B
    else:
        align = 16 if jnp.dtype(x.dtype).itemsize < 4 else 8
        tb = max(align, (max_batch_tile // align) * align)

    grid = (pl.cdiv(B, tb),)   # no jnp.pad: partial final block is masked by Pallas

    itemsize = jnp.dtype(x.dtype).itemsize
    cost = pl.CostEstimate(
        flops=2 * B * two_na * two_nb + 3 * B * nb,
        transcendentals=0,
        bytes_accessed=B * two_na * itemsize          # stream x
        + two_na * two_nb * itemsize                  # weights (read once)
        + B * nb * 4,                                 # f32 output
    )

    grid_spec = pl.GridSpec(
        grid=grid,
        in_specs=[
            pl.BlockSpec((tb, two_na), lambda i: (i, 0)),       # stream x tiles
            pl.BlockSpec((two_na, two_nb), lambda i: (0, 0)),   # weights resident in VMEM
        ],
        out_specs=pl.BlockSpec((tb, nb), lambda i: (i, 0)),
    )
    return pl.pallas_call(
        node_kernel,
        out_shape=jax.ShapeDtypeStruct((B, nb), jnp.float32),
        grid_spec=grid_spec,
        compiler_params=pltpu.CompilerParams(
            dimension_semantics=("parallel",)),   # megacore sharding on v7x at large B
        cost_estimate=cost,
    )(x, w_big)


def node_reference(x, w_real, w_imag):
    """Pure-JAX reference mirroring the PyTorch forward."""
    na = w_real.shape[1]
    xr, xi = x[:, :na], x[:, na:]
    yr = xr @ w_real.T - xi @ w_imag.T
    yi = xr @ w_imag.T + xi @ w_real.T
    return yr * yr + yi * yi


if __name__ == "__main__":
    key = jax.random.PRNGKey(0)
    k_theta, k_x = jax.random.split(key)

    # PhaseShifter.theta ~ U[0, 2*pi), shape (n_beam, n_antenna); scale = sqrt(Na).
    theta = jax.random.uniform(
        k_theta, (N_BEAM, N_ANTENNA), dtype=jnp.float32,
        minval=0.0, maxval=2.0 * np.pi)
    scale = jnp.float32(np.sqrt(N_ANTENNA))
    w_real = jnp.cos(theta) / scale
    w_imag = jnp.sin(theta) / scale

    # Combined codebook built ONCE outside the per-call path.
    w_big = make_combined_weight(w_real, w_imag)

    # Example input: (batch, 2*n_antenna) = [real | imag] parts of the channel.
    x = jax.random.normal(k_x, (BATCH, 2 * N_ANTENNA), dtype=jnp.float32)

    fwd = jax.jit(node_forward)

    # f32 path
    bf_gain = jax.block_until_ready(fwd(x, w_big))
    ref = node_reference(x, w_real, w_imag)
    np.testing.assert_allclose(np.asarray(bf_gain), np.asarray(ref),
                               rtol=1e-5, atol=1e-6)

    # bf16-input path (halves HBM read bytes; f32 accumulation in-kernel).
    bf_gain_bf16 = jax.block_until_ready(fwd(x.astype(jnp.bfloat16), w_big))
    np.testing.assert_allclose(np.asarray(bf_gain_bf16), np.asarray(ref),
                               rtol=5e-2, atol=2e-2)

    # dense_1 / relu / softmax are declared in __init__ but unused in forward,
    # so they are intentionally not part of the kernel.
    print("KERNEL_OK")
</pallas_src>

<mosaic_0001>
module attributes {stable_mosaic.version = 11 : i64} {
  func.func @node_kernel(%arg0: i32, %arg1: memref<16x128xf32, #tpu.memory_space<vmem>>, %arg2: memref<128x4xf32, #tpu.memory_space<vmem>>, %arg3: memref<16x2xf32, #tpu.memory_space<vmem>>) attributes {dimension_semantics = [#tpu.dimension_semantics<parallel>], iteration_bounds = array<i64: 1>, scalar_prefetch = 0 : i64, scratch_operands = 0 : i64, tpu.core_type = #tpu.core_type<tc>, window_params = [{transform_indices = @transform_0, window_bounds = array<i64: 16, 128>}, {pipeline_mode = #tpu.pipeline_mode<synchronous>, transform_indices = @transform_1, window_bounds = array<i64: 128, 4>}, {transform_indices = @transform_2, window_bounds = array<i64: 16, 2>}]} {
    %c0 = arith.constant 0 : index
    %c0_0 = arith.constant 0 : index
    %0 = vector.load %arg1[%c0, %c0_0] : memref<16x128xf32, #tpu.memory_space<vmem>>, vector<16x128xf32>
    %c0_1 = arith.constant 0 : index
    %c0_2 = arith.constant 0 : index
    %1 = vector.load %arg2[%c0_1, %c0_2] : memref<128x4xf32, #tpu.memory_space<vmem>>, vector<128x4xf32>
    %cst = arith.constant dense<0.000000e+00> : vector<16x4xf32>
    %2 = tpu.matmul %0, %1, %cst {dimension_numbers = #tpu.dot_dimension_numbers<[1], [0], [0], [1], [0, 0, 1, 1], [], []>} : vector<16x128xf32>, vector<128x4xf32>, vector<16x4xf32> -> vector<16x4xf32>
    %3 = vector.extract_strided_slice %2 {offsets = [0, 0], sizes = [16, 2], strides = [1, 1]} : vector<16x4xf32> to vector<16x2xf32>
    %4 = vector.extract_strided_slice %2 {offsets = [0, 2], sizes = [16, 2], strides = [1, 1]} : vector<16x4xf32> to vector<16x2xf32>
    %5 = arith.mulf %3, %3 : vector<16x2xf32>
    %6 = arith.mulf %4, %4 : vector<16x2xf32>
    %7 = arith.addf %5, %6 : vector<16x2xf32>
    %c0_3 = arith.constant 0 : index
    %c0_4 = arith.constant 0 : index
    %8 = vector.load %arg3[%c0_3, %c0_4] : memref<16x2xf32, #tpu.memory_space<vmem>>, vector<16x2xf32>
    tpu.vector_store %arg3[%c0_3, %c0_4], %7 {strides = array<i32>} : memref<16x2xf32, #tpu.memory_space<vmem>>, vector<16x2xf32>,
    return
  }
  func.func @transform_0(%arg0: i32) -> (i32, i32) {
    %c0_i32 = arith.constant 0 : i32
    %c0_i32_0 = arith.constant 0 : i32
    return %arg0, %c0_i32 : i32, i32
  }
  func.func @transform_1(%arg0: i32) -> (i32, i32) {
    %c0_i32 = arith.constant 0 : i32
    %c0_i32_0 = arith.constant 0 : i32
    %c0_i32_1 = arith.constant 0 : i32
    return %c0_i32, %c0_i32_0 : i32, i32
  }
  func.func @transform_2(%arg0: i32) -> (i32, i32) {
    %c0_i32 = arith.constant 0 : i32
    %c0_i32_0 = arith.constant 0 : i32
    return %arg0, %c0_i32 : i32, i32
  }
}

</mosaic_0001>

<llo_original>
// kernel: node_forward.1
$region0: #{node_forward.1}
  #allocation0 [shape = 'u32[]', space=smem, size = 0x4, offset = 0x4, fixed_abs, tag = 'smem constant byte address 0x4 - core index']
  #allocation1 [shape = 'u32[144,128]{1,0:T(1,128)}', space=vmem, size = 0x12000, scoped, tag = 'internal scratch']
  %s0 = inlined_call_operand.vmem [shape: f32[16,128], index: 0, kind: input, shape index: {}]
  %s1 = inlined_call_operand.vmem [shape: f32[128,4], index: 1, kind: input, shape index: {}]
  %s2 = inlined_call_operand.vmem [shape: f32[16,2], index: 2, kind: output, shape index: {}]
  %s3 = sld [smem:[#allocation0]]
  $region18: #{node_forward.1} parent=0
    _
  %s5 = ssub.s32 1, %s3
  %s6 = scalar_select 0, %s5, %s3
  // Predicated region
  $region2: #{node_forward.1} parent=0 // pred_check
    _
  $region3: #{node_forward.1} parent=0 // pred_check_branch
    %8 = sbr.rel (0) target = $region5
  $region4: #{node_forward.1} parent=0 // pred_region
    _
  $region5: #{node_forward.1} parent=0 // pred_fallthru
    _
  // Predicated region
  $region6: #{node_forward.1} parent=0 // pred_check
    _
  $region7: #{node_forward.1} parent=0 // pred_check_branch
    %10 = sbr.rel (0) target = $region9
  $region8: #{node_forward.1} parent=0 // pred_region
    _
  $region9: #{node_forward.1} parent=0 // pred_fallthru
    _
  %v11 = vld [vmem:[%s0] sm:$0xff]
  %v12 = vld [vmem:[%s0 + $0x8] sm:$0xff]
  %v13 = vld [vmem:[%s1] sm:$0xff]
  %v14 = vld [vmem:[%s1 + $0x8] sm:$0xff]
  %v15 = vld [vmem:[%s1 + $0x10] sm:$0xff]
  %v16 = vld [vmem:[%s1 + $0x18] sm:$0xff]
  %v17 = vld [vmem:[%s1 + $0x20] sm:$0xff]
  %v18 = vld [vmem:[%s1 + $0x28] sm:$0xff]
  %v19 = vld [vmem:[%s1 + $0x30] sm:$0xff]
  %v20 = vld [vmem:[%s1 + $0x38] sm:$0xff]
  %v21 = vld [vmem:[%s1 + $0x40] sm:$0xff]
  %v22 = vld [vmem:[%s1 + $0x48] sm:$0xff]
  %v23 = vld [vmem:[%s1 + $0x50] sm:$0xff]
  %v24 = vld [vmem:[%s1 + $0x58] sm:$0xff]
  %v25 = vld [vmem:[%s1 + $0x60] sm:$0xff]
  %v26 = vld [vmem:[%s1 + $0x68] sm:$0xff]
  %v27 = vld [vmem:[%s1 + $0x70] sm:$0xff]
  %v28 = vld [vmem:[%s1 + $0x78] sm:$0xff]
  %29 = vmatprep.subr.mxu0 0.0
  %30 = vmatpush1.msra.mxu0 %v13
  %31 = vmatprep.subr.mxu0 0.0
  %32 = vmatpush1.msra.mxu0 %v14
  %33 = vmatprep.subr.mxu0 0.0
  %34 = vmatpush1.msra.mxu0 %v15
  %35 = vmatprep.subr.mxu0 0.0
  %36 = vmatpush1.msra.mxu0 %v16
  %37 = vmatprep.subr.mxu0 0.0
  %38 = vmatpush1.msra.mxu0 %v17
  %39 = vmatprep.subr.mxu0 0.0
  %40 = vmatpush1.msra.mxu0 %v18
  %41 = vmatprep.subr.mxu0 0.0
  %42 = vmatpush1.msra.mxu0 %v19
  %43 = vmatprep.subr.mxu0 0.0
  %44 = vmatpush1.msra.mxu0 %v20
  %45 = vmatprep.subr.mxu0 0.0
  %46 = vmatpush1.msra.mxu0 %v21
  %47 = vmatprep.subr.mxu0 0.0
  %48 = vmatpush1.msra.mxu0 %v22
  %49 = vmatprep.subr.mxu0 0.0
  %50 = vmatpush1.msra.mxu0 %v23
  %51 = vmatprep.subr.mxu0 0.0
  %52 = vmatpush1.msra.mxu0 %v24
  %53 = vmatprep.subr.mxu0 0.0
  %54 = vmatpush1.msra.mxu0 %v25
  %55 = vmatprep.subr.mxu0 0.0
  %56 = vmatpush1.msra.mxu0 %v26
  %57 = vmatprep.subr.mxu0 0.0
  %58 = vmatpush1.msra.mxu0 %v27
  %59 = vmatprep.subr.mxu0 0.0
  %60 = vmatpush1.msra.mxu0 %v28
  %61 = vmatprep.subr.mxu0 0.0
  %62 = vmatpush1.msra.mxu0 0.0
  %63 = vmatprep.subr.mxu0 0.0
  %64 = vmatpush1.msra.mxu0 0.0
  %65 = vmatprep.subr.mxu0 0.0
  %66 = vmatpush1.msra.mxu0 0.0
  %67 = vmatprep.subr.mxu0 0.0
  %68 = vmatpush1.msra.mxu0 0.0
  %69 = vmatprep.subr.mxu0 0.0
  %70 = vmatpush1.msra.mxu0 0.0
  %71 = vmatprep.subr.mxu0 0.0
  %72 = vmatpush1.msra.mxu0 0.0
  %73 = vmatprep.subr.mxu0 0.0
  %74 = vmatpush1.msra.mxu0 0.0
  %75 = vmatprep.subr.mxu0 0.0
  %76 = vmatpush1.msra.mxu0 0.0
  %77 = vmatprep.subr.mxu0 0.0
  %78 = vmatpush1.msra.mxu0 0.0
  %79 = vmatprep.subr.mxu0 0.0
  %80 = vmatpush1.msra.mxu0 0.0
  %81 = vmatprep.subr.mxu0 0.0
  %82 = vmatpush1.msra.mxu0 0.0
  %83 = vmatprep.subr.mxu0 0.0
  %84 = vmatpush1.msra.mxu0 0.0
  %85 = vmatprep.subr.mxu0 0.0
  %86 = vmatpush1.msra.mxu0 0.0
  %87 = vmatprep.subr.mxu0 0.0
  %88 = vmatpush1.msra.mxu0 0.0
  %89 = vmatprep.subr.mxu0 0.0
  %90 = vmatpush1.msra.mxu0 0.0
  %91 = vmatprep.subr.mxu0 0.0
  %92 = vmatpush1.msra.mxu0 0.0
  %93 = vmatprep.mubr.f32.mxu0 0.0
  %94 = vmatmul.mubr.f32.gmra.mrb[0].mxu0 %v11
  %v95 = vpop.f32.mrb[0].mxu0
  %v96 = vadd.f32 0.0, %v95
  %v97 = vpop.f32.mrb[0].mxu0
  %98 = vmatprep.mubr.f32.mxu0 0.0
  %99 = vmatmul.mubr.f32.gmra.mrb[0].mxu0 %v12
  %v100 = vpop.f32.mrb[0].mxu0
  %v101 = vadd.f32 0.0, %v100
  %v102 = vpop.f32.mrb[0].mxu0
  %103 = vdwg.mxu0
  %v104 = vmul.f32 %v96, %v96
  %v105 = vmul.f32 %v101, %v101
  %108 = vrot.lane.b32.xlu0 %v104, 126
  %v109 = vpop.permute.xlu0 %108
  %110 = vrot.lane.b32.xlu0 %v105, 126
  %v111 = vpop.permute.xlu0 %110
  %v114 = vadd.f32 %v104, %v109
  %v115 = vadd.f32 %v105, %v111
  %vm116 = vcmask 15360
  %117 = vst.msk [vmem:[%s2] sm:$0xff] %vm116, %v114
  %118 = vst.msk [vmem:[%s2 + $0x8] sm:$0xff] %vm116, %v115
  // Predicated region
  $region10: #{node_forward.1} parent=0 // pred_check
    _
  $region11: #{node_forward.1} parent=0 // pred_check_branch
    %120 = sbr.rel (0) target = $region13
  $region12: #{node_forward.1} parent=0 // pred_region
    _
  $region13: #{node_forward.1} parent=0 // pred_fallthru
    _
  // Predicated region
  $region14: #{node_forward.1} parent=0 // pred_check
    _
  $region15: #{node_forward.1} parent=0 // pred_check_branch
    %122 = sbr.rel (0) target = $region17
  $region16: #{node_forward.1} parent=0 // pred_region
    _
  $region17: #{node_forward.1} parent=0 // pred_fallthru
    _

</llo_original>
